<compile_context>
chip_gen: v5e
topology: v5e:2x2
jax: 0.10.0
libtpu: 0.0.40
codegen_flags: <defaults>
</compile_context>

<pallas_src>
import math

import jax
import jax.numpy as jnp
from jax.experimental import pallas as pl
from jax.experimental.pallas import tpu as pltpu


def _self_attention_kernel(x_ref, w_ref, b_ref, o_ref):
    """One grid step handles a tile of BT batch rows.

    x_ref : (BT, S, D)  input tile
    w_ref : (S, D)      attention weights (resident, shared across batch)
    b_ref : (1, S)      attention bias    (resident, shared across batch)
    o_ref : (BT, D)     output tile (sublane/lane-dense slab)
    """
    xf = x_ref[...].astype(jnp.float32)          # (BT, S, D), f32 math everywhere
    w = w_ref[...].astype(jnp.float32)           # (S, D)
    bias = b_ref[...].astype(jnp.float32)        # (1, S)

    # scores[b, s] = tanh( <x[b, s, :], w[s, :]> + bias[s] )
    # VPU multiply + lane reduce over D; tanh goes to the (otherwise idle) EUP.
    # The w broadcast over BT is done once per block (hoisted, not in a loop).
    scores = jnp.tanh(jnp.sum(xf * w[None, :, :], axis=-1) + bias)      # (BT, S)

    # out[b, :] = sum_s scores[b, s] * x[b, s, :]
    # Batched MXU contraction over S with an f32 accumulator (frees VPU/XLU at
    # production-sized S); at toy S it is still correct, just underutilized.
    out = jnp.einsum(
        "bks,bsd->bkd", scores[:, None, :], xf,
        preferred_element_type=jnp.float32,
    )                                                                   # (BT, 1, D)
    o_ref[...] = out[:, 0, :].astype(o_ref.dtype)


def _working_set_bytes(bt, S, D, x_itemsize, out_itemsize):
    """Double-buffered pipeline footprint for one grid step."""
    x_blk = bt * S * D * x_itemsize
    w_blk = S * D * x_itemsize
    b_blk = S * 4
    o_blk = bt * D * out_itemsize
    return 2 * (x_blk + w_blk + b_blk + o_blk)


def _choose_batch_tile(B, S, D, itemsize, budget_bytes=32 * 1024 * 1024):
    """Pick BT: multiple of 8 (sublane-dense (BT, D) output block), <=128,
    aiming for >=2 grid steps when B allows (keeps both v7x TCs busy), and
    shrunk until the double-buffered working set fits the VMEM budget."""
    if B <= 8:
        return B                       # block == full batch dim; always legal
    bt = min(128, max(8, ((B // 2) // 8) * 8))
    while bt > 8 and _working_set_bytes(bt, S, D, itemsize, itemsize) > budget_bytes:
        bt = max(8, ((bt // 2) // 8) * 8)
    return bt


def self_attention_pallas(x, atten_w, atten_bias):
    """x: (B, S, D); atten_w: (S, D, 1); atten_bias: (S, 1, 1).

    Returns (B, D) (matches torch `weighted_sum.squeeze()` for B > 1; for B == 1
    torch would squeeze to (D,) — callers should be aware).
    """
    B, S, D = x.shape
    w2d = atten_w.reshape(S, D).astype(x.dtype)        # DMA weights at x's width
    b1s = atten_bias.reshape(1, S).astype(jnp.float32)

    itemsize = jnp.dtype(x.dtype).itemsize
    bt = _choose_batch_tile(B, S, D, itemsize)
    grid = (pl.cdiv(B, bt),)

    est = _working_set_bytes(bt, S, D, itemsize, itemsize)
    # Explicit scoped-VMEM limit: covers v5e's 16 MiB default, stays well under
    # v7x's 64 MiB physical VMEM.
    vmem_limit = int(min(max(2 * est, 16 * 1024 * 1024), 48 * 1024 * 1024))

    out = pl.pallas_call(
        _self_attention_kernel,
        out_shape=jax.ShapeDtypeStruct((B, D), x.dtype),
        grid_spec=pltpu.PrefetchScalarGridSpec(
            num_scalar_prefetch=0,
            grid=grid,
            in_specs=[
                pl.BlockSpec((bt, S, D), lambda b: (b, 0, 0)),   # x: BT rows/step
                pl.BlockSpec((S, D), lambda b: (0, 0)),          # weights: resident
                pl.BlockSpec((1, S), lambda b: (0, 0)),          # bias: resident
            ],
            out_specs=pl.BlockSpec((bt, D), lambda b: (b, 0)),   # lane-dense slab
        ),
        compiler_params=pltpu.CompilerParams(
            dimension_semantics=("parallel",),                   # batch tiles shard across TCs
            vmem_limit_bytes=vmem_limit,
        ),
    )(x, w2d, b1s)

    return out


def init_params(key, seq_len, input_size):
    """Deterministic glorot-uniform weights, zero bias (as in the module)."""
    stdv = math.sqrt(6.0 / (input_size + 1))          # sizes (-2, -1) of (S, D, 1)
    atten_w = jax.random.uniform(
        key, (seq_len, input_size, 1), minval=-stdv, maxval=stdv, dtype=jnp.float32
    )
    atten_bias = jnp.zeros((seq_len, 1, 1), dtype=jnp.float32)
    return atten_w, atten_bias


def self_attention_ref(x, atten_w, atten_bias):
    """Pure-JAX (elementwise, full-f32) reference mirroring the torch forward."""
    w = atten_w[..., 0]                               # (S, D)
    b = atten_bias[:, 0, 0]                           # (S,)
    scores = jnp.tanh(jnp.sum(x * w[None, :, :], axis=-1) + b[None, :])   # (B, S)
    return jnp.sum(scores[:, :, None] * x, axis=1)                        # (B, D)


if __name__ == "__main__":
    B, S, D = 8, 8, 32   # batch, window_size (seq_len), input_size

    key = jax.random.PRNGKey(0)
    kx, kw = jax.random.split(key)

    x = jax.random.normal(kx, (B, S, D), dtype=jnp.float32)
    atten_w, atten_bias = init_params(kw, S, D)

    out = self_attention_pallas(x, atten_w, atten_bias)
    out = jax.block_until_ready(out)

    ref = self_attention_ref(x, atten_w, atten_bias)
    assert out.shape == (B, D)
    # MXU f32 contraction vs. pure-VPU reference: allow a small tolerance.
    assert jnp.allclose(out, ref, atol=1e-3, rtol=1e-3), float(
        jnp.max(jnp.abs(out - ref))
    )

    print("KERNEL_OK")
</pallas_src>

<mosaic_0001>
module attributes {stable_mosaic.version = 11 : i64} {
  func.func @_self_attention_kernel(%arg0: i32, %arg1: memref<8x8x32xf32, #tpu.memory_space<vmem>>, %arg2: memref<8x32xf32, #tpu.memory_space<vmem>>, %arg3: memref<1x8xf32, #tpu.memory_space<vmem>>, %arg4: memref<8x32xf32, #tpu.memory_space<vmem>>) attributes {dimension_semantics = [#tpu.dimension_semantics<parallel>], iteration_bounds = array<i64: 1>, scalar_prefetch = 0 : i64, scratch_operands = 0 : i64, tpu.core_type = #tpu.core_type<tc>, window_params = [{transform_indices = @transform_0, window_bounds = array<i64: 8, 8, 32>}, {pipeline_mode = #tpu.pipeline_mode<synchronous>, transform_indices = @transform_1, window_bounds = array<i64: 8, 32>}, {pipeline_mode = #tpu.pipeline_mode<synchronous>, transform_indices = @transform_2, window_bounds = array<i64: 1, 8>}, {transform_indices = @transform_3, window_bounds = array<i64: 8, 32>}]} {
    %c0 = arith.constant 0 : index
    %c0_0 = arith.constant 0 : index
    %c0_1 = arith.constant 0 : index
    %0 = vector.load %arg1[%c0, %c0_0, %c0_1] : memref<8x8x32xf32, #tpu.memory_space<vmem>>, vector<8x8x32xf32>
    %c0_2 = arith.constant 0 : index
    %c0_3 = arith.constant 0 : index
    %1 = vector.load %arg2[%c0_2, %c0_3] : memref<8x32xf32, #tpu.memory_space<vmem>>, vector<8x32xf32>
    %c0_4 = arith.constant 0 : index
    %c0_5 = arith.constant 0 : index
    %2 = vector.load %arg3[%c0_4, %c0_5] : memref<1x8xf32, #tpu.memory_space<vmem>>, vector<1x8xf32>
    %3 = vector.shape_cast %1 : vector<8x32xf32> to vector<1x8x32xf32>
    %4 = vector.broadcast %3 : vector<1x8x32xf32> to vector<8x8x32xf32>
    %5 = arith.mulf %0, %4 : vector<8x8x32xf32>
    %cst = arith.constant dense<0.000000e+00> : vector<8x8xf32>
    %6 = vector.multi_reduction <add>, %5, %cst [2] : vector<8x8x32xf32> to vector<8x8xf32>
    %7 = vector.broadcast %2 : vector<1x8xf32> to vector<8x8xf32>
    %8 = arith.addf %6, %7 : vector<8x8xf32>
    %9 = math.tanh %8 : vector<8x8xf32>
    %10 = vector.shape_cast %9 : vector<8x8xf32> to vector<8x1x8xf32>
    "tpu.trace_start"() <{level = 10 : i32, message = "bks,bsd->bkd"}> : () -> ()
    %cst_6 = arith.constant dense<0.000000e+00> : vector<8x1x32xf32>
    %11 = tpu.matmul %10, %0, %cst_6 {dimension_numbers = #tpu.dot_dimension_numbers<[2], [1], [1], [2], [0, 0, 0, 1, 1, 2], [0], [0]>} : vector<8x1x8xf32>, vector<8x8x32xf32>, vector<8x1x32xf32> -> vector<8x1x32xf32>
    "tpu.trace_stop"() : () -> ()
    %12 = vector.shape_cast %11 : vector<8x1x32xf32> to vector<8x32xf32>
    %c0_7 = arith.constant 0 : index
    %c0_8 = arith.constant 0 : index
    %13 = vector.load %arg4[%c0_7, %c0_8] : memref<8x32xf32, #tpu.memory_space<vmem>>, vector<8x32xf32>
    tpu.vector_store %arg4[%c0_7, %c0_8], %12 {strides = array<i32>} : memref<8x32xf32, #tpu.memory_space<vmem>>, vector<8x32xf32>,
    return
  }
  func.func @transform_0(%arg0: i32) -> (i32, i32, i32) {
    %c0_i32 = arith.constant 0 : i32
    %c0_i32_0 = arith.constant 0 : i32
    %c0_i32_1 = arith.constant 0 : i32
    return %arg0, %c0_i32, %c0_i32_0 : i32, i32, i32
  }
  func.func @transform_1(%arg0: i32) -> (i32, i32) {
    %c0_i32 = arith.constant 0 : i32
    %c0_i32_0 = arith.constant 0 : i32
    %c0_i32_1 = arith.constant 0 : i32
    return %c0_i32, %c0_i32_0 : i32, i32
  }
  func.func @transform_2(%arg0: i32) -> (i32, i32) {
    %c0_i32 = arith.constant 0 : i32
    %c0_i32_0 = arith.constant 0 : i32
    %c0_i32_1 = arith.constant 0 : i32
    return %c0_i32, %c0_i32_0 : i32, i32
  }
  func.func @transform_3(%arg0: i32) -> (i32, i32) {
    %c0_i32 = arith.constant 0 : i32
    %c0_i32_0 = arith.constant 0 : i32
    return %arg0, %c0_i32 : i32, i32
  }
}

</mosaic_0001>

<llo_original>
// kernel: tpu_custom_call.1
$region0: #{tpu_custom_call.1}
  #allocation0 [shape = 'u32[]', space=smem, size = 0x4, offset = 0x4, fixed_abs, tag = 'smem constant byte address 0x4 - core index']
  #allocation1 [shape = 'u32[72,128]{1,0:T(1,128)}', space=vmem, size = 0x9000, scoped, tag = 'internal scratch']
  %s0 = inlined_call_operand.hbm [shape: f32[8,8,32], index: 0, kind: input, shape index: {}]
  %s1 = inlined_call_operand.hbm [shape: f32[8,32], index: 1, kind: input, shape index: {}]
  %s2 = inlined_call_operand.vmem [shape: f32[1,8], index: 2, kind: input, shape index: {}]
  %s3 = inlined_call_operand.hbm [shape: f32[8,32], index: 3, kind: output, shape index: {}]
  %s4 = sld [smem:[#allocation0]]
  $region30: #{tpu_custom_call.1} parent=0
    _
  %s6 = ssub.s32 1, %s4
  %s7 = scalar_select 0, %s6, %s4
  $region1: #{tpu_custom_call.1} parent=0
    #allocation2 [shape = 'u8[32768]{0}', space=vmem, size = 0x8000, scoped, tag = 'input window, operand 0, single buffered']
    #allocation3 [shape = 's32[1]{0}', space=sflag, size = 0x4, scoped, tag = 'scoped memory for tpu_custom_call.1']
    #allocation4 [shape = 's32[1]{0}', space=sflag, size = 0x4, scoped, tag = 'scoped memory for tpu_custom_call.1']
    #allocation5 [shape = 'u8[4096]{0}', space=vmem, size = 0x1000, scoped, tag = 'input window, operand 1, single buffered']
    #allocation6 [shape = 's32[1]{0}', space=sflag, size = 0x4, scoped, tag = 'scoped memory for tpu_custom_call.1']
    #allocation7 [shape = 'u8[4096]{0}', space=vmem, size = 0x1000, scoped, tag = 'output window, operand 0, single buffered']
    %8 = vsyncpa [#allocation3], 0
    %9 = vsyncpa [#allocation6], 0
    %10 = vsyncpa [#allocation4], 0
    // Predicated region
    $region2: #{tpu_custom_call.1} parent=1 // pred_check
      _
    $region3: #{tpu_custom_call.1} parent=1 // pred_check_branch
      %12 = sbr.rel (0) target = $region5
    $region4: #{tpu_custom_call.1} parent=1 // pred_region
      %14 = vsyncadd [#allocation3], 0
      %s15 = sshll.u32 %s0, 4
      %s16 = int_to_ptr.hbm [resolvable:$true] %s15
      %s17 = sshll.u32 [#allocation2], 4
      %s18 = int_to_ptr.vmem [resolvable:$true] %s17
      %23 = dma.hbm_to_vmem [thread:$0]  %s16, 1024, %s18, [#allocation3], 128, 128, 8
    $region5: #{tpu_custom_call.1} parent=1 // pred_fallthru
      _
    // Predicated region
    $region6: #{tpu_custom_call.1} parent=1 // pred_check
      _
    $region7: #{tpu_custom_call.1} parent=1 // pred_check_branch
      %25 = sbr.rel (0) target = $region9
    $region8: #{tpu_custom_call.1} parent=1 // pred_region
      %27 = vsyncadd [#allocation6], 0
      %s29 = sshll.u32 %s1, 4
      %s30 = int_to_ptr.hbm [resolvable:$true] %s29
      %s31 = sshll.u32 [#allocation5], 4
      %s32 = int_to_ptr.vmem [resolvable:$true] %s31
      %34 = dma.hbm_to_vmem [thread:$0]  %s30, 128, %s32, [#allocation6]
    $region9: #{tpu_custom_call.1} parent=1 // pred_fallthru
      _
    // Predicated region
    $region10: #{tpu_custom_call.1} parent=1 // pred_check
      _
    $region11: #{tpu_custom_call.1} parent=1 // pred_check_branch
      %36 = sbr.rel (0) target = $region13
    $region12: #{tpu_custom_call.1} parent=1 // pred_region
      _
    $region13: #{tpu_custom_call.1} parent=1 // pred_fallthru
      _
    // Predicated region
    $region14: #{tpu_custom_call.1} parent=1 // pred_check
      _
    $region15: #{tpu_custom_call.1} parent=1 // pred_check_branch
      %38 = sbr.rel (0) target = $region17
    $region16: #{tpu_custom_call.1} parent=1 // pred_region
      %40 = dma.done [#allocation3], 1024
    $region17: #{tpu_custom_call.1} parent=1 // pred_fallthru
      _
    // Predicated region
    $region18: #{tpu_custom_call.1} parent=1 // pred_check
      _
    $region19: #{tpu_custom_call.1} parent=1 // pred_check_branch
      %42 = sbr.rel (0) target = $region21
    $region20: #{tpu_custom_call.1} parent=1 // pred_region
      %44 = dma.done [#allocation6], 128
    $region21: #{tpu_custom_call.1} parent=1 // pred_fallthru
      _
    %v45 = vld [vmem:[#allocation2] sm:$0xff]
    %v46 = vld [vmem:[#allocation2 + $0x8] sm:$0xff]
    %v47 = vld [vmem:[#allocation2 + $0x10] sm:$0xff]
    %v48 = vld [vmem:[#allocation2 + $0x18] sm:$0xff]
    %v49 = vld [vmem:[#allocation2 + $0x20] sm:$0xff]
    %v50 = vld [vmem:[#allocation2 + $0x28] sm:$0xff]
    %v51 = vld [vmem:[#allocation2 + $0x30] sm:$0xff]
    %v52 = vld [vmem:[#allocation2 + $0x38] sm:$0xff]
    %v53 = vld [vmem:[#allocation5] sm:$0xff]
    %v54 = vld [vmem:[%s2] sm:$0x1]
    %v55 = vmul.f32 %v45, %v53
    %v56 = vmul.f32 %v46, %v53
    %v57 = vmul.f32 %v47, %v53
    %v58 = vmul.f32 %v48, %v53
    %v59 = vmul.f32 %v49, %v53
    %v60 = vmul.f32 %v50, %v53
    %v61 = vmul.f32 %v51, %v53
    %v62 = vmul.f32 %v52, %v53
    %vm63 = vcmask 261120
    %v64 = vsel %vm63, %v55, 0.0
    %65 = vadd.xlane.f32.xlu0 %v64
    %v66 = vpop.xlane.xlu0 %65
    %v67 = vsel %vm63, %v56, 0.0
    %68 = vadd.xlane.f32.xlu0 %v67
    %v69 = vpop.xlane.xlu0 %68
    %v70 = vsel %vm63, %v57, 0.0
    %71 = vadd.xlane.f32.xlu0 %v70
    %v72 = vpop.xlane.xlu0 %71
    %v73 = vsel %vm63, %v58, 0.0
    %74 = vadd.xlane.f32.xlu0 %v73
    %v75 = vpop.xlane.xlu0 %74
    %v76 = vsel %vm63, %v59, 0.0
    %77 = vadd.xlane.f32.xlu0 %v76
    %v78 = vpop.xlane.xlu0 %77
    %v79 = vsel %vm63, %v60, 0.0
    %80 = vadd.xlane.f32.xlu0 %v79
    %v81 = vpop.xlane.xlu0 %80
    %v82 = vsel %vm63, %v61, 0.0
    %83 = vadd.xlane.f32.xlu0 %v82
    %v84 = vpop.xlane.xlu0 %83
    %v85 = vsel %vm63, %v62, 0.0
    %86 = vadd.xlane.f32.xlu0 %v85
    %v87 = vpop.xlane.xlu0 %86
    %v89 = vperm.slane %v54, 0
    %v90 = vlaneseq
    %v91 = vshrl.u32 %v90, 7
    %93 = vset.pattern.permute.xlu0 %v91
    %94 = vperm.xlu0 %93, %v89
    %v95 = vpop.permute.xlu0 %94
    %v97 = vadd.f32 %v66, %v95
    %v98 = vadd.f32 %v69, %v95
    %v99 = vadd.f32 %v72, %v95
    %v100 = vadd.f32 %v75, %v95
    %v101 = vadd.f32 %v78, %v95
    %v102 = vadd.f32 %v81, %v95
    %v103 = vadd.f32 %v84, %v95
    %v104 = vadd.f32 %v87, %v95
    %v105 = vtanh.pop %v97
    %v106 = vtanh.pop %v98
    %v107 = vtanh.pop %v99
    %v108 = vtanh.pop %v100
    %v109 = vtanh.pop %v101
    %v110 = vtanh.pop %v102
    %v111 = vtanh.pop %v103
    %v112 = vtanh.pop %v104
    %114 = vset.pattern.permute.xlu0 0
    %115 = vperm.xlu0 %114, %v105
    %v116 = vpop.permute.xlu0 %115
    %v117 = vlaneseq
    %v118 = vand.u32 %v117, 127
    %v119 = vperm.slane %v116, %v118
    %vm120 = vcmask 64512
    %v121 = vsel %vm120, %v119, 0
    %123 = vmatpush.msra.mxu0 0.0
    %124 = vmatpush.msra.mxu0 0.0
    %125 = vmatpush.msra.mxu0 0.0
    %126 = vmatpush.msra.mxu0 0.0
    %127 = vmatpush.msra.mxu0 0.0
    %128 = vmatpush.msra.mxu0 0.0
    %129 = vmatpush.msra.mxu0 0.0
    %130 = vmatpush.msra.mxu0 0.0
    %131 = vmatpush.msra.mxu0 0.0
    %132 = vmatpush.msra.mxu0 0.0
    %133 = vmatpush.msra.mxu0 0.0
    %134 = vmatpush.msra.mxu0 0.0
    %135 = vmatpush.msra.mxu0 0.0
    %136 = vmatpush.msra.mxu0 0.0
    %137 = vmatpush.msra.mxu0 0.0
    %138 = vmatpush.msra.mxu0 %v45
    %139 = vmatmul.f32.gmra.mxu0 %v121
    %v140 = vpop.f32.mrf.mxu0
    %v141 = vadd.f32 0.0, %v140
    %142 = vdwg.mxu0
    %144 = vset.pattern.permute.xlu0 0
    %145 = vperm.xlu0 %144, %v106
    %v146 = vpop.permute.xlu0 %145
    %v147 = vperm.slane %v146, %v118
    %v148 = vsel %vm120, %v147, 0
    %150 = vmatpush.msra.mxu0 0.0
    %151 = vmatpush.msra.mxu0 0.0
    %152 = vmatpush.msra.mxu0 0.0
    %153 = vmatpush.msra.mxu0 0.0
    %154 = vmatpush.msra.mxu0 0.0
    %155 = vmatpush.msra.mxu0 0.0
    %156 = vmatpush.msra.mxu0 0.0
    %157 = vmatpush.msra.mxu0 0.0
    %158 = vmatpush.msra.mxu0 0.0
    %159 = vmatpush.msra.mxu0 0.0
    %160 = vmatpush.msra.mxu0 0.0
    %161 = vmatpush.msra.mxu0 0.0
    %162 = vmatpush.msra.mxu0 0.0
    %163 = vmatpush.msra.mxu0 0.0
    %164 = vmatpush.msra.mxu0 0.0
    %165 = vmatpush.msra.mxu0 %v46
    %166 = vmatmul.f32.gmra.mxu0 %v148
    %v167 = vpop.f32.mrf.mxu0
    %v168 = vadd.f32 0.0, %v167
    %169 = vdwg.mxu0
    %171 = vset.pattern.permute.xlu0 0
    %172 = vperm.xlu0 %171, %v107
    %v173 = vpop.permute.xlu0 %172
    %v174 = vperm.slane %v173, %v118
    %v175 = vsel %vm120, %v174, 0
    %177 = vmatpush.msra.mxu0 0.0
    %178 = vmatpush.msra.mxu0 0.0
    %179 = vmatpush.msra.mxu0 0.0
    %180 = vmatpush.msra.mxu0 0.0
    %181 = vmatpush.msra.mxu0 0.0
    %182 = vmatpush.msra.mxu0 0.0
    %183 = vmatpush.msra.mxu0 0.0
    %184 = vmatpush.msra.mxu0 0.0
    %185 = vmatpush.msra.mxu0 0.0
    %186 = vmatpush.msra.mxu0 0.0
    %187 = vmatpush.msra.mxu0 0.0
    %188 = vmatpush.msra.mxu0 0.0
    %189 = vmatpush.msra.mxu0 0.0
    %190 = vmatpush.msra.mxu0 0.0
    %191 = vmatpush.msra.mxu0 0.0
    %192 = vmatpush.msra.mxu0 %v47
    %193 = vmatmul.f32.gmra.mxu0 %v175
    %v194 = vpop.f32.mrf.mxu0
    %v195 = vadd.f32 0.0, %v194
    %196 = vdwg.mxu0
    %198 = vset.pattern.permute.xlu0 0
    %199 = vperm.xlu0 %198, %v108
    %v200 = vpop.permute.xlu0 %199
    %v201 = vperm.slane %v200, %v118
    %v202 = vsel %vm120, %v201, 0
    %204 = vmatpush.msra.mxu0 0.0
    %205 = vmatpush.msra.mxu0 0.0
    %206 = vmatpush.msra.mxu0 0.0
    %207 = vmatpush.msra.mxu0 0.0
    %208 = vmatpush.msra.mxu0 0.0
    %209 = vmatpush.msra.mxu0 0.0
    %210 = vmatpush.msra.mxu0 0.0
    %211 = vmatpush.msra.mxu0 0.0
    %212 = vmatpush.msra.mxu0 0.0
    %213 = vmatpush.msra.mxu0 0.0
    %214 = vmatpush.msra.mxu0 0.0
    %215 = vmatpush.msra.mxu0 0.0
    %216 = vmatpush.msra.mxu0 0.0
    %217 = vmatpush.msra.mxu0 0.0
    %218 = vmatpush.msra.mxu0 0.0
    %219 = vmatpush.msra.mxu0 %v48
    %220 = vmatmul.f32.gmra.mxu0 %v202
    %v221 = vpop.f32.mrf.mxu0
    %v222 = vadd.f32 0.0, %v221
    %223 = vdwg.mxu0
    %225 = vset.pattern.permute.xlu0 0
    %226 = vperm.xlu0 %225, %v109
    %v227 = vpop.permute.xlu0 %226
    %v228 = vperm.slane %v227, %v118
    %v229 = vsel %vm120, %v228, 0
    %231 = vmatpush.msra.mxu0 0.0
    %232 = vmatpush.msra.mxu0 0.0
    %233 = vmatpush.msra.mxu0 0.0
    %234 = vmatpush.msra.mxu0 0.0
    %235 = vmatpush.msra.mxu0 0.0
    %236 = vmatpush.msra.mxu0 0.0
    %237 = vmatpush.msra.mxu0 0.0
    %238 = vmatpush.msra.mxu0 0.0
    %239 = vmatpush.msra.mxu0 0.0
    %240 = vmatpush.msra.mxu0 0.0
    %241 = vmatpush.msra.mxu0 0.0
    %242 = vmatpush.msra.mxu0 0.0
    %243 = vmatpush.msra.mxu0 0.0
    %244 = vmatpush.msra.mxu0 0.0
    %245 = vmatpush.msra.mxu0 0.0
    %246 = vmatpush.msra.mxu0 %v49
    %247 = vmatmul.f32.gmra.mxu0 %v229
    %v248 = vpop.f32.mrf.mxu0
    %v249 = vadd.f32 0.0, %v248
    %250 = vdwg.mxu0
    %252 = vset.pattern.permute.xlu0 0
    %253 = vperm.xlu0 %252, %v110
    %v254 = vpop.permute.xlu0 %253
    %v255 = vperm.slane %v254, %v118
    %v256 = vsel %vm120, %v255, 0
    %258 = vmatpush.msra.mxu0 0.0
    %259 = vmatpush.msra.mxu0 0.0
    %260 = vmatpush.msra.mxu0 0.0
    %261 = vmatpush.msra.mxu0 0.0
    %262 = vmatpush.msra.mxu0 0.0
    %263 = vmatpush.msra.mxu0 0.0
    %264 = vmatpush.msra.mxu0 0.0
    %265 = vmatpush.msra.mxu0 0.0
    %266 = vmatpush.msra.mxu0 0.0
    %267 = vmatpush.msra.mxu0 0.0
    %268 = vmatpush.msra.mxu0 0.0
    %269 = vmatpush.msra.mxu0 0.0
    %270 = vmatpush.msra.mxu0 0.0
    %271 = vmatpush.msra.mxu0 0.0
    %272 = vmatpush.msra.mxu0 0.0
    %273 = vmatpush.msra.mxu0 %v50
    %274 = vmatmul.f32.gmra.mxu0 %v256
    %v275 = vpop.f32.mrf.mxu0
    %v276 = vadd.f32 0.0, %v275
    %277 = vdwg.mxu0
    %279 = vset.pattern.permute.xlu0 0
    %280 = vperm.xlu0 %279, %v111
    %v281 = vpop.permute.xlu0 %280
    %v282 = vperm.slane %v281, %v118
    %v283 = vsel %vm120, %v282, 0
    %285 = vmatpush.msra.mxu0 0.0
    %286 = vmatpush.msra.mxu0 0.0
    %287 = vmatpush.msra.mxu0 0.0
    %288 = vmatpush.msra.mxu0 0.0
    %289 = vmatpush.msra.mxu0 0.0
    %290 = vmatpush.msra.mxu0 0.0
    %291 = vmatpush.msra.mxu0 0.0
    %292 = vmatpush.msra.mxu0 0.0
    %293 = vmatpush.msra.mxu0 0.0
    %294 = vmatpush.msra.mxu0 0.0
    %295 = vmatpush.msra.mxu0 0.0
    %296 = vmatpush.msra.mxu0 0.0
    %297 = vmatpush.msra.mxu0 0.0
    %298 = vmatpush.msra.mxu0 0.0
    %299 = vmatpush.msra.mxu0 0.0
    %300 = vmatpush.msra.mxu0 %v51
    %301 = vmatmul.f32.gmra.mxu0 %v283
    %v302 = vpop.f32.mrf.mxu0
    %v303 = vadd.f32 0.0, %v302
    %304 = vdwg.mxu0
    %306 = vset.pattern.permute.xlu0 0
    %307 = vperm.xlu0 %306, %v112
    %v308 = vpop.permute.xlu0 %307
    %v309 = vperm.slane %v308, %v118
    %v310 = vsel %vm120, %v309, 0
    %312 = vmatpush.msra.mxu0 0.0
    %313 = vmatpush.msra.mxu0 0.0
    %314 = vmatpush.msra.mxu0 0.0
    %315 = vmatpush.msra.mxu0 0.0
    %316 = vmatpush.msra.mxu0 0.0
    %317 = vmatpush.msra.mxu0 0.0
    %318 = vmatpush.msra.mxu0 0.0
    %319 = vmatpush.msra.mxu0 0.0
    %320 = vmatpush.msra.mxu0 0.0
    %321 = vmatpush.msra.mxu0 0.0
    %322 = vmatpush.msra.mxu0 0.0
    %323 = vmatpush.msra.mxu0 0.0
    %324 = vmatpush.msra.mxu0 0.0
    %325 = vmatpush.msra.mxu0 0.0
    %326 = vmatpush.msra.mxu0 0.0
    %327 = vmatpush.msra.mxu0 %v52
    %328 = vmatmul.f32.gmra.mxu0 %v310
    %v329 = vpop.f32.mrf.mxu0
    %v330 = vadd.f32 0.0, %v329
    %331 = vdwg.mxu0
    %v340 = vrot.slane %v168, 7
    %vm341 = vcmask 1041409
    %v342 = vsel %vm341, %v340, %v141
    %v343 = vrot.slane %v195, 6
    %vm344 = vcmask 1042434
    %v345 = vsel %vm344, %v343, %v342
    %v346 = vrot.slane %v222, 5
    %vm347 = vcmask 1043459
    %v348 = vsel %vm347, %v346, %v345
    %v349 = vrot.slane %v249, 4
    %vm350 = vcmask 1044484
    %v351 = vsel %vm350, %v349, %v348
    %v352 = vrot.slane %v276, 3
    %vm353 = vcmask 1045509
    %v354 = vsel %vm353, %v352, %v351
    %v355 = vrot.slane %v303, 2
    %vm356 = vcmask 1046534
    %v357 = vsel %vm356, %v355, %v354
    %v358 = vrot.slane %v330, 1
    %vm359 = vcmask 1047559
    %v360 = vsel %vm359, %v358, %v357
    %362 = vst.msk [vmem:[#allocation7] sm:$0xff] %vm63, %v360
    // Predicated region
    $region22: #{tpu_custom_call.1} parent=1 // pred_check
      _
    $region23: #{tpu_custom_call.1} parent=1 // pred_check_branch
      %364 = sbr.rel (0) target = $region25
    $region24: #{tpu_custom_call.1} parent=1 // pred_region
      %366 = vsyncadd [#allocation4], 0
      %s368 = sshll.u32 [#allocation7], 4
      %s369 = int_to_ptr.vmem [resolvable:$true] %s368
      %s370 = sshll.u32 %s3, 4
      %s371 = int_to_ptr.hbm [resolvable:$true] %s370
      %373 = dma.vmem_to_hbm [thread:$0]  %s369, 128, %s371, [#allocation4]
    $region25: #{tpu_custom_call.1} parent=1 // pred_fallthru
      _
    // Predicated region
    $region26: #{tpu_custom_call.1} parent=1 // pred_check
      _
    $region27: #{tpu_custom_call.1} parent=1 // pred_check_branch
      %375 = sbr.rel (0) target = $region29
    $region28: #{tpu_custom_call.1} parent=1 // pred_region
      %377 = dma.done [#allocation4], 128
    $region29: #{tpu_custom_call.1} parent=1 // pred_fallthru
      _
    %378 = vsyncpa [#allocation3], 1
    %379 = vsyncpa [#allocation6], 1
    %380 = vsyncpa [#allocation4], 1

</llo_original>
